<compile_context>
chip_gen: v7x
topology: tpu7x:2x2x1
jax: 0.10.0
libtpu: 0.0.40
codegen_flags: <defaults>
</compile_context>

<pallas_src>
import functools

import jax
import jax.numpy as jnp
from jax import lax
from jax.experimental import pallas as pl
from jax.experimental.pallas import tpu as pltpu


def _vq_kernel(x_ref, w_ref, wt_ref, wsq_ref, q_ref, idx_ref, sse_ref, *,
               distance_dtype):
    """One (batch b, spatial tile t) grid step, channels-major layout.

    x_ref  : (1, C, TH)  activation slab (NCHW-native, channels on sublanes)
    w_ref  : (K, D)      full codebook (VMEM-resident across the whole grid)
    wt_ref : (D, K)      codebook transpose (for the gather matmul)
    wsq_ref: (K, 1)      0.5 * ||w_k||^2, precomputed in JAX
    q_ref  : (1, C, TH)  quantized slab (output, channels-major)
    idx_ref: (1, 1, TH)  int32 nearest-code indices (output, lane-dense)
    sse_ref: (1, 1, 128) per-tile SSE partial (output, broadcast scalar)
    """
    x = x_ref[0]                                   # (D, TH)
    w = w_ref[...]                                 # (K, D)
    K = w.shape[0]

    # Distance surrogate on the MXU: 0.5*||w||^2 - w @ x.
    # The per-row ||x||^2 term is dropped (constant per row -> argmin-invariant)
    # and the factor 2 is folded into the precomputed 0.5*||w||^2.
    dots = jnp.dot(w.astype(distance_dtype), x.astype(distance_dtype),
                   preferred_element_type=jnp.float32)           # (K, TH)
    dist = wsq_ref[...] - dots                                   # (K, TH)

    # argmin over codes (axis 0), first-occurrence tie-break (== torch.argmin).
    # NB: the fill value K is only reachable if dist contains NaN.
    code = lax.broadcasted_iota(jnp.int32, dist.shape, dimension=0)
    dmin = jnp.min(dist, axis=0, keepdims=True)                  # (1, TH)
    idx = jnp.min(jnp.where(dist == dmin, code, K), axis=0,
                  keepdims=True)                                 # (1, TH)
    idx_ref[0] = idx.astype(jnp.int32)

    # Exact gather via one-hot matmul (MXU), produced directly in (D, TH)
    # layout so no transpose is needed before the channels-major store.
    # 0/1 values are exact in the codebook's native dtype.
    onehot = (code == idx).astype(wt_ref.dtype)                  # (K, TH)
    q = jnp.dot(wt_ref[...], onehot, preferred_element_type=jnp.float32)
    q_ref[0] = q.astype(q_ref.dtype)                             # (D, TH)

    # Per-tile SSE partial for the training loss (summed in JAX outside).
    diff = q - x.astype(jnp.float32)
    sse_ref[...] = jnp.full(sse_ref.shape, jnp.sum(diff * diff), jnp.float32)


def _tile_bytes(rows, cols, itemsize):
    """VMEM bytes of a (rows, cols) tile after (8, 128) layout padding."""
    return ((rows + 7) // 8) * 8 * ((cols + 127) // 128) * 128 * itemsize


def _footprint_bytes(th, C, K, D, xi, wi):
    """Rough VMEM footprint for one grid step (I/O blocks double-buffered)."""
    io = 2 * (2 * _tile_bytes(C, th, xi)         # x + quantized slabs
              + _tile_bytes(1, th, 4)            # indices
              + _tile_bytes(1, 128, 4)           # SSE partial
              + _tile_bytes(K, D, wi)            # codebook
              + _tile_bytes(D, K, wi)            # codebook^T
              + _tile_bytes(K, 1, 4))            # 0.5*||w||^2 (lane-padded!)
    tmp = (5 * _tile_bytes(K, th, 4)             # dots/dist/iota/mask/one-hot
           + 3 * _tile_bytes(max(C, 8), th, 4))  # q/diff f32 temporaries
    return io + tmp


def _pick_hw_tile(hw, preferred, budget, C, K, D, xi, wi, prefer_split):
    """Largest spatial tile that divides H*W, is a multiple of 128 (or the
    full extent), and whose estimated VMEM footprint fits the budget."""
    valid = [d for d in range(128, hw + 1, 128) if hw % d == 0]
    if not valid:
        return hw                 # full-extent block is always layout-legal
    if prefer_split:              # keep >= 2 grid steps for megacore when B==1
        nonfull = [d for d in valid if d < hw]
        if nonfull:
            valid = nonfull
    for th in sorted(valid, reverse=True):
        if th <= preferred and _footprint_bytes(th, C, K, D, xi, wi) <= budget:
            return th
    return min(valid)


@functools.partial(
    jax.jit,
    static_argnames=("commitment_cost", "training", "tile_hw", "distance_dtype"),
)
def vq_forward(x_nchw, codebook, *, commitment_cost=0.25, training=True,
               tile_hw=2048, distance_dtype=None):
    """VQ.forward.  x_nchw: (B, C, H, W), codebook: (K, C)."""
    B, C, H, W = x_nchw.shape
    K, D = codebook.shape
    assert D == C, "embedding_size must equal the channel dim"
    HW = H * W
    N = B * HW

    xi = x_nchw.dtype.itemsize
    wi = codebook.dtype.itemsize

    try:
        vmem_cap = int(pltpu.get_tpu_info().vmem_capacity_bytes)
    except Exception:  # pragma: no cover - conservative fallback (v7x size)
        vmem_cap = 64 * 2**20
    budget = vmem_cap // 2

    if 4 * _tile_bytes(K, D, wi) > budget:
        # TODO(synk): codebooks that do not fit VMEM need a K-chunked
        # online-argmin variant; typical VQ-VAE codebooks (e.g. 8192x256 f32
        # = 8 MiB) fit comfortably.
        raise ValueError("codebook too large for the VMEM-resident VQ kernel")

    th = _pick_hw_tile(HW, tile_hw, budget, C, K, D, xi, wi,
                       prefer_split=(B == 1))
    n_hw_tiles = HW // th

    dist_dtype = (jnp.dtype(distance_dtype) if distance_dtype is not None
                  else x_nchw.dtype)
    kernel = functools.partial(_vq_kernel, distance_dtype=dist_dtype)

    vmem_limit = int(min(vmem_cap * 3 // 4,
                         max(32 * 2**20,
                             (5 * _footprint_bytes(th, C, K, D, xi, wi)) // 4)))

    # Free (metadata-only) reshape: NCHW is already channels-major.
    x_r = x_nchw.reshape(B, C, HW)
    codebook_t = jnp.transpose(codebook)                              # (D, K)
    w_sq_half = 0.5 * jnp.sum(jnp.square(codebook.astype(jnp.float32)),
                              axis=1, keepdims=True)                  # (K, 1)

    q_r, idx_r, sse_partials = pl.pallas_call(
        kernel,
        out_shape=(
            jax.ShapeDtypeStruct((B, C, HW), x_nchw.dtype),           # quantized
            jax.ShapeDtypeStruct((B, 1, HW), jnp.int32),              # indices
            jax.ShapeDtypeStruct((B, 1, n_hw_tiles * 128), jnp.float32),  # SSE
        ),
        grid_spec=pltpu.PrefetchScalarGridSpec(
            num_scalar_prefetch=0,
            grid=(B, n_hw_tiles),
            in_specs=[
                pl.BlockSpec((1, C, th), lambda b, t: (b, 0, t)),     # x slab
                pl.BlockSpec((K, D), lambda b, t: (0, 0)),            # codebook
                pl.BlockSpec((D, K), lambda b, t: (0, 0)),            # codebook^T
                pl.BlockSpec((K, 1), lambda b, t: (0, 0)),            # 0.5*||w||^2
            ],
            out_specs=[
                pl.BlockSpec((1, C, th), lambda b, t: (b, 0, t)),     # quantized
                pl.BlockSpec((1, 1, th), lambda b, t: (b, 0, t)),     # indices
                pl.BlockSpec((1, 1, 128), lambda b, t: (b, 0, t)),    # SSE
            ],
        ),
        compiler_params=pltpu.CompilerParams(
            # No reduction axis: every output block is written exactly once,
            # so both grid axes can shard across TensorCores (v7x megacore).
            dimension_semantics=("parallel", "parallel"),
            vmem_limit_bytes=vmem_limit,
        ),
    )(x_r, codebook, codebook_t, w_sq_half)

    quantized = q_r.reshape(B, C, H, W)
    indices = idx_r.reshape(B, 1, H, W)

    if training:
        sse = jnp.sum(sse_partials.reshape(B, n_hw_tiles, 128)[:, :, 0])
        mse = sse / jnp.float32(N * D)
        # Forward values: e_latent_loss == q_latent_loss == mse, so
        # loss = q_latent_loss + commitment_cost * e_latent_loss.
        loss = (1.0 + commitment_cost) * mse
    else:
        loss = jnp.float32(0.0)
    return quantized, indices, loss


def _reference_vq(x_nchw, codebook, commitment_cost=0.25, training=True):
    """Pure-JAX reference mirroring the PyTorch forward, for sanity checking."""
    B, C, H, W = x_nchw.shape
    x = jnp.transpose(x_nchw, (0, 2, 3, 1))
    x_flat = x.reshape(-1, C)
    dist = (jnp.sum(x_flat**2, axis=1, keepdims=True)
            + jnp.sum(codebook**2, axis=1)
            - 2.0 * x_flat @ codebook.T)
    idx = jnp.argmin(dist, axis=1)
    q_flat = codebook[idx]
    quantized = q_flat.reshape(B, H, W, C)
    loss = ((1.0 + commitment_cost) * jnp.mean((quantized - x) ** 2)
            if training else 0.0)
    indices = idx.reshape(B, H, W)[:, None, :, :]
    return jnp.transpose(quantized, (0, 3, 1, 2)), indices, loss


if __name__ == "__main__":
    num_embeddings = 16
    embedding_size = 4
    B, H, W = 2, 16, 16

    key = jax.random.PRNGKey(0)
    kx, kw = jax.random.split(key)
    # nn.Embedding weight init: uniform(-1/K, 1/K), shape (K, D)
    codebook = jax.random.uniform(
        kw, (num_embeddings, embedding_size), jnp.float32,
        minval=-1.0 / num_embeddings, maxval=1.0 / num_embeddings)
    x = jax.random.normal(kx, (B, embedding_size, H, W), dtype=jnp.float32)

    quantized, indices, loss = vq_forward(x, codebook, commitment_cost=0.25,
                                          training=True)
    jax.block_until_ready((quantized, indices, loss))

    # Sanity check against the pure-JAX reference (exact f32 distance path).
    q_ref, i_ref, l_ref = _reference_vq(x, codebook)
    assert quantized.shape == (B, embedding_size, H, W)
    assert indices.shape == (B, 1, H, W)
    assert jnp.allclose(quantized, q_ref, atol=1e-5)
    assert jnp.array_equal(indices, i_ref.astype(indices.dtype))
    assert jnp.allclose(loss, l_ref, rtol=1e-5, atol=1e-6)

    # Exercise the bf16-MXU distance option (v6e/v7x perf path).  No strict
    # numeric assert: bf16 distances may flip argmin on near-exact ties.
    q_bf, i_bf, l_bf = vq_forward(x, codebook, commitment_cost=0.25,
                                  training=True, distance_dtype=jnp.bfloat16)
    jax.block_until_ready((q_bf, i_bf, l_bf))
    assert q_bf.shape == quantized.shape and i_bf.shape == indices.shape

    print("KERNEL_OK")
</pallas_src>

<mosaic_0001>
module attributes {stable_mosaic.version = 11 : i64} {
  func.func @_vq_kernel(%arg0: i32, %arg1: i32, %arg2: memref<1x4x256xf32, #tpu.memory_space<vmem>>, %arg3: memref<16x4xf32, #tpu.memory_space<vmem>>, %arg4: memref<4x16xf32, #tpu.memory_space<vmem>>, %arg5: memref<16x1xf32, #tpu.memory_space<vmem>>, %arg6: memref<1x4x256xf32, #tpu.memory_space<vmem>>, %arg7: memref<1x1x256xi32, #tpu.memory_space<vmem>>, %arg8: memref<1x1x128xf32, #tpu.memory_space<vmem>>) attributes {dimension_semantics = [#tpu.dimension_semantics<parallel>, #tpu.dimension_semantics<parallel>], iteration_bounds = array<i64: 2, 1>, scalar_prefetch = 0 : i64, scratch_operands = 0 : i64, tpu.core_type = #tpu.core_type<tc>, window_params = [{transform_indices = @transform_0, window_bounds = array<i64: 1, 4, 256>}, {pipeline_mode = #tpu.pipeline_mode<synchronous>, transform_indices = @transform_1, window_bounds = array<i64: 16, 4>}, {pipeline_mode = #tpu.pipeline_mode<synchronous>, transform_indices = @transform_2, window_bounds = array<i64: 4, 16>}, {pipeline_mode = #tpu.pipeline_mode<synchronous>, transform_indices = @transform_3, window_bounds = array<i64: 16, 1>}, {transform_indices = @transform_4, window_bounds = array<i64: 1, 4, 256>}, {transform_indices = @transform_5, window_bounds = array<i64: 1, 1, 256>}, {transform_indices = @transform_6, window_bounds = array<i64: 1, 1, 128>}]} {
    %c0 = arith.constant 0 : index
    %c0_0 = arith.constant 0 : index
    %c0_1 = arith.constant 0 : index
    %0 = vector.load %arg2[%c0, %c0_0, %c0_1] : memref<1x4x256xf32, #tpu.memory_space<vmem>>, vector<1x4x256xf32>
    %1 = vector.shape_cast %0 : vector<1x4x256xf32> to vector<4x256xf32>
    %c0_2 = arith.constant 0 : index
    %c0_3 = arith.constant 0 : index
    %2 = vector.load %arg3[%c0_2, %c0_3] : memref<16x4xf32, #tpu.memory_space<vmem>>, vector<16x4xf32>
    %cst = arith.constant dense<0.000000e+00> : vector<16x256xf32>
    %3 = tpu.matmul %2, %1, %cst {dimension_numbers = #tpu.dot_dimension_numbers<[1], [0], [0], [1], [0, 0, 1, 1], [], []>} : vector<16x4xf32>, vector<4x256xf32>, vector<16x256xf32> -> vector<16x256xf32>
    %c0_4 = arith.constant 0 : index
    %c0_5 = arith.constant 0 : index
    %4 = vector.load %arg5[%c0_4, %c0_5] : memref<16x1xf32, #tpu.memory_space<vmem>>, vector<16x1xf32>
    %5 = vector.broadcast %4 : vector<16x1xf32> to vector<16x256xf32>
    %6 = arith.subf %5, %3 : vector<16x256xf32>
    %7 = tpu.iota {dimensions = array<i32: 0>} : vector<16x256xi32>
    %cst_6 = arith.constant dense<0x7F800000> : vector<256xf32>
    %8 = vector.multi_reduction <minimumf>, %6, %cst_6 [0] : vector<16x256xf32> to vector<256xf32>
    %9 = vector.shape_cast %8 : vector<256xf32> to vector<1x256xf32>
    %10 = vector.broadcast %9 : vector<1x256xf32> to vector<16x256xf32>
    %11 = arith.cmpf oeq, %6, %10 : vector<16x256xf32>
    %c16_i32 = arith.constant 16 : i32
    %12 = vector.broadcast %c16_i32 : i32 to vector<16x256xi32>
    %13 = arith.select %11, %7, %12 : vector<16x256xi1>, vector<16x256xi32>
    %cst_7 = arith.constant dense<2147483647> : vector<256xi32>
    %14 = vector.multi_reduction <minsi>, %13, %cst_7 [0] : vector<16x256xi32> to vector<256xi32>
    %15 = vector.shape_cast %14 : vector<256xi32> to vector<1x256xi32>
    %c0_8 = arith.constant 0 : index
    %c0_9 = arith.constant 0 : index
    %c0_10 = arith.constant 0 : index
    %16 = vector.load %arg7[%c0_8, %c0_9, %c0_10] : memref<1x1x256xi32, #tpu.memory_space<vmem>>, vector<1x1x256xi32>
    %17 = vector.shape_cast %16 : vector<1x1x256xi32> to vector<1x256xi32>
    %18 = vector.shape_cast %15 : vector<1x256xi32> to vector<1x1x256xi32>
    tpu.vector_store %arg7[%c0_8, %c0_9, %c0_10], %18 {strides = array<i32>} : memref<1x1x256xi32, #tpu.memory_space<vmem>>, vector<1x1x256xi32>,
    %19 = vector.broadcast %15 : vector<1x256xi32> to vector<16x256xi32>
    %20 = arith.cmpi eq, %7, %19 : vector<16x256xi32>
    %21 = arith.extui %20 : vector<16x256xi1> to vector<16x256xi32>
    %22 = arith.sitofp %21 : vector<16x256xi32> to vector<16x256xf32>
    %c0_11 = arith.constant 0 : index
    %c0_12 = arith.constant 0 : index
    %23 = vector.load %arg4[%c0_11, %c0_12] : memref<4x16xf32, #tpu.memory_space<vmem>>, vector<4x16xf32>
    %cst_13 = arith.constant dense<0.000000e+00> : vector<4x256xf32>
    %24 = tpu.matmul %23, %22, %cst_13 {dimension_numbers = #tpu.dot_dimension_numbers<[1], [0], [0], [1], [0, 0, 1, 1], [], []>} : vector<4x16xf32>, vector<16x256xf32>, vector<4x256xf32> -> vector<4x256xf32>
    %c0_14 = arith.constant 0 : index
    %c0_15 = arith.constant 0 : index
    %c0_16 = arith.constant 0 : index
    %25 = vector.load %arg6[%c0_14, %c0_15, %c0_16] : memref<1x4x256xf32, #tpu.memory_space<vmem>>, vector<1x4x256xf32>
    %26 = vector.shape_cast %25 : vector<1x4x256xf32> to vector<4x256xf32>
    %27 = vector.shape_cast %24 : vector<4x256xf32> to vector<1x4x256xf32>
    tpu.vector_store %arg6[%c0_14, %c0_15, %c0_16], %27 {strides = array<i32>} : memref<1x4x256xf32, #tpu.memory_space<vmem>>, vector<1x4x256xf32>,
    %28 = arith.subf %24, %1 : vector<4x256xf32>
    %29 = arith.mulf %28, %28 : vector<4x256xf32>
    %30 = vector.shape_cast %29 : vector<4x256xf32> to vector<1x4x256xf32>
    %cst_17 = arith.constant dense<0.000000e+00> : vector<1xf32>
    %31 = vector.multi_reduction <add>, %30, %cst_17 [1, 2] : vector<1x4x256xf32> to vector<1xf32>
    %32 = vector.shape_cast %31 : vector<1xf32> to vector<1x1x1xf32>
    %33 = vector.extract %32[0, 0, 0] : f32 from vector<1x1x1xf32>
    %34 = vector.broadcast %33 : f32 to vector<1x1x128xf32>
    %c0_18 = arith.constant 0 : index
    %c0_19 = arith.constant 0 : index
    %c0_20 = arith.constant 0 : index
    %35 = vector.load %arg8[%c0_18, %c0_19, %c0_20] : memref<1x1x128xf32, #tpu.memory_space<vmem>>, vector<1x1x128xf32>
    tpu.vector_store %arg8[%c0_18, %c0_19, %c0_20], %34 {strides = array<i32>} : memref<1x1x128xf32, #tpu.memory_space<vmem>>, vector<1x1x128xf32>,
    return
  }
  func.func @transform_0(%arg0: i32, %arg1: i32) -> (i32, i32, i32) {
    %c0_i32 = arith.constant 0 : i32
    %c0_i32_0 = arith.constant 0 : i32
    return %arg0, %c0_i32, %arg1 : i32, i32, i32
  }
  func.func @transform_1(%arg0: i32, %arg1: i32) -> (i32, i32) {
    %c0_i32 = arith.constant 0 : i32
    %c0_i32_0 = arith.constant 0 : i32
    %c0_i32_1 = arith.constant 0 : i32
    return %c0_i32, %c0_i32_0 : i32, i32
  }
  func.func @transform_2(%arg0: i32, %arg1: i32) -> (i32, i32) {
    %c0_i32 = arith.constant 0 : i32
    %c0_i32_0 = arith.constant 0 : i32
    %c0_i32_1 = arith.constant 0 : i32
    return %c0_i32, %c0_i32_0 : i32, i32
  }
  func.func @transform_3(%arg0: i32, %arg1: i32) -> (i32, i32) {
    %c0_i32 = arith.constant 0 : i32
    %c0_i32_0 = arith.constant 0 : i32
    %c0_i32_1 = arith.constant 0 : i32
    return %c0_i32, %c0_i32_0 : i32, i32
  }
  func.func @transform_4(%arg0: i32, %arg1: i32) -> (i32, i32, i32) {
    %c0_i32 = arith.constant 0 : i32
    %c0_i32_0 = arith.constant 0 : i32
    return %arg0, %c0_i32, %arg1 : i32, i32, i32
  }
  func.func @transform_5(%arg0: i32, %arg1: i32) -> (i32, i32, i32) {
    %c0_i32 = arith.constant 0 : i32
    %c0_i32_0 = arith.constant 0 : i32
    return %arg0, %c0_i32, %arg1 : i32, i32, i32
  }
  func.func @transform_6(%arg0: i32, %arg1: i32) -> (i32, i32, i32) {
    %c0_i32 = arith.constant 0 : i32
    %c0_i32_0 = arith.constant 0 : i32
    return %arg0, %c0_i32, %arg1 : i32, i32, i32
  }
}

</mosaic_0001>

<llo_original>
// kernel: vq_forward.1
$region0: #{vq_forward.1}
  #allocation0 [shape = 'u32[]', space=smem, size = 0x4, offset = 0x4, fixed_abs, tag = 'smem constant byte address 0x4 - core index']
  #allocation1 [shape = 'u32[144,128]{1,0:T(1,128)}', space=vmem, size = 0x12000, scoped, tag = 'internal scratch']
  %s0 = inlined_call_operand.vmem [shape: f32[2,4,256], index: 0, kind: input, shape index: {}]
  %s1 = inlined_call_operand.vmem [shape: f32[16,4], index: 1, kind: input, shape index: {}]
  %s2 = inlined_call_operand.vmem [shape: f32[4,16], index: 2, kind: input, shape index: {}]
  %s3 = inlined_call_operand.vmem [shape: f32[16,1], index: 3, kind: input, shape index: {}]
  %s4 = inlined_call_operand.vmem [shape: f32[2,4,256], index: 4, kind: output, shape index: {0}]
  %s5 = inlined_call_operand.vmem [shape: s32[2,1,256], index: 5, kind: output, shape index: {1}]
  %s6 = inlined_call_operand.vmem [shape: f32[2,1,128], index: 6, kind: output, shape index: {2}]
  %7 = xla_tuple %s4, %s5, %s6
  %s8 = sld [smem:[#allocation0]]
  $region65: #{vq_forward.1} parent=0
    _
  %s10 = ssub.s32 1, %s8
  %s11 = scalar_select 0, %s10, %s8
  loop: start=0, step=1, limit=4
  $region2: #{vq_forward.1} parent=0 // loop_pre_header
    _
  $region3: #{vq_forward.1} parent=0 // loop_header
    %s13 = sphi 0, %s17
    %p14 = scmp.ge.s32.totalorder %s13, 4
    %s20 = sphi 0, %s32
    %s21 = sphi 0, %s28
    %s22 = sphi 0, %s20
    %s23 = sphi 0, %s21
    %s24 = sphi 0, %s22
    %s25 = sphi 0, %s23
    %s37 = sphi 0, %s39
    %s40 = sphi 0, %s37
    %s41 = sphi 0, %s40
    %s57 = sphi 0, %s41
    %s61 = sphi 0, %s61
    %s63 = sphi 0, %s61
    %s64 = sphi 0, %s63
    %s78 = sphi 0, %s64
    %s82 = sphi 0, %s82
    %s84 = sphi 0, %s82
    %s85 = sphi 0, %s84
    %s99 = sphi 0, %s85
    %s103 = sphi 0, %s103
    %s105 = sphi 0, %s103
    %s106 = sphi 0, %s105
    %s120 = sphi 0, %s106
    %s128 = sphi 0, %s130
    %s131 = sphi 0, %s128
    %s132 = sphi 0, %s131
    %s148 = sphi 0, %s132
    %s156 = sphi 0, %s158
    %s159 = sphi 0, %s156
    %s160 = sphi 0, %s159
    %s176 = sphi 0, %s160
    %s184 = sphi 0, %s186
    %s187 = sphi 0, %s184
    %s188 = sphi 0, %s187
    %s204 = sphi 0, %s188
  $region4: #{vq_forward.1} parent=0 // loop_header_branch
    %16 = sbr.rel (%p14) target = $region8
  $region5: #{vq_forward.1} parent=0 // loop_body
    %s18 = ssub.s32 %s13, 1
    %s19 = ssub.s32 %s13, 2
    %s26 = sadd.s32 1, %s21
    %p27 = scmp.ge.s32.totalorder %s26, 1
    %s28 = scalar_select %p27, 0, %s26
    %s29 = sadd.s32 1, %s20
    %s30 = scalar_select %p27, %s29, %s20
    %p31 = scmp.ge.s32.totalorder %s30, 2
    %s32 = scalar_select %p31, 0, %s30
    %s33 = ssub.s32 %s20, %s32
    %s34 = ssub.s32 %s21, %s28
    %s35 = sor.u32 %s33, %s34
    %p36 = scmp.eq.s32.totalorder %s35, 0
    %s38 = sadd.s32 %s37, 1
    %s39 = scalar_select %p36, %s37, %s38
    %p42 = pneg %p36
    %p43 = scmp.eq.s32.totalorder %s13, 1
    %p44 = por %p42, %p43
    %p45 = scmp.ne.s32.totalorder %s37, %s40
    %p46 = scmp.eq.s32.totalorder %s13, 0
    %p47 = por %p45, %p46
    %p48 = scmp.ne.s32.totalorder %s37, %s40
    %p49 = scmp.eq.s32.totalorder %s18, 1
    %p50 = por %p48, %p49
    %p51 = scmp.ne.s32.totalorder %s40, %s41
    %p52 = scmp.eq.s32.totalorder %s18, 0
    %p53 = por %p51, %p52
    %p54 = scmp.ne.s32.totalorder %s40, %s41
    %p55 = scmp.eq.s32.totalorder %s19, 1
    %p56 = por %p54, %p55
    %p58 = scmp.ne.s32.totalorder %s41, %s57
    %p59 = scmp.eq.s32.totalorder %s19, 0
    %p60 = por %p58, %p59
    %s62 = sadd.s32 %s61, 1
    %p65 = scmp.eq.s32.totalorder %s13, 1
    %p66 = scmp.ne.s32.totalorder %s61, %s63
    %p67 = scmp.eq.s32.totalorder %s13, 0
    %p68 = por %p66, %p67
    %p69 = scmp.ne.s32.totalorder %s61, %s63
    %p70 = scmp.eq.s32.totalorder %s18, 1
    %p71 = por %p69, %p70
    %p72 = scmp.ne.s32.totalorder %s63, %s64
    %p73 = scmp.eq.s32.totalorder %s18, 0
    %p74 = por %p72, %p73
    %p75 = scmp.ne.s32.totalorder %s63, %s64
    %p76 = scmp.eq.s32.totalorder %s19, 1
    %p77 = por %p75, %p76
    %p79 = scmp.ne.s32.totalorder %s64, %s78
    %p80 = scmp.eq.s32.totalorder %s19, 0
    %p81 = por %p79, %p80
    %s83 = sadd.s32 %s82, 1
    %p86 = scmp.eq.s32.totalorder %s13, 1
    %p87 = scmp.ne.s32.totalorder %s82, %s84
    %p88 = scmp.eq.s32.totalorder %s13, 0
    %p89 = por %p87, %p88
    %p90 = scmp.ne.s32.totalorder %s82, %s84
    %p91 = scmp.eq.s32.totalorder %s18, 1
    %p92 = por %p90, %p91
    %p93 = scmp.ne.s32.totalorder %s84, %s85
    %p94 = scmp.eq.s32.totalorder %s18, 0
    %p95 = por %p93, %p94
    %p96 = scmp.ne.s32.totalorder %s84, %s85
    %p97 = scmp.eq.s32.totalorder %s19, 1
    %p98 = por %p96, %p97
    %p100 = scmp.ne.s32.totalorder %s85, %s99
    %p101 = scmp.eq.s32.totalorder %s19, 0
    %p102 = por %p100, %p101
    %s104 = sadd.s32 %s103, 1
    %p107 = scmp.eq.s32.totalorder %s13, 1
    %p108 = scmp.ne.s32.totalorder %s103, %s105
    %p109 = scmp.eq.s32.totalorder %s13, 0
    %p110 = por %p108, %p109
    %p111 = scmp.ne.s32.totalorder %s103, %s105
    %p112 = scmp.eq.s32.totalorder %s18, 1
    %p113 = por %p111, %p112
    %p114 = scmp.ne.s32.totalorder %s105, %s106
    %p115 = scmp.eq.s32.totalorder %s18, 0
    %p116 = por %p114, %p115
    %p117 = scmp.ne.s32.totalorder %s105, %s106
    %p118 = scmp.eq.s32.totalorder %s19, 1
    %p119 = por %p117, %p118
    %p121 = scmp.ne.s32.totalorder %s106, %s120
    %p122 = scmp.eq.s32.totalorder %s19, 0
    %p123 = por %p121, %p122
    %s124 = ssub.s32 %s20, %s32
    %s125 = ssub.s32 %s21, %s28
    %s126 = sor.u32 %s124, %s125
    %p127 = scmp.eq.s32.totalorder %s126, 0
    %s129 = sadd.s32 %s128, 1
    %s130 = scalar_select %p127, %s128, %s129
    %p133 = pneg %p127
    %p134 = scmp.eq.s32.totalorder %s13, 1
    %p135 = por %p133, %p134
    %p136 = scmp.ne.s32.totalorder %s128, %s131
    %p137 = scmp.eq.s32.totalorder %s13, 0
    %p138 = por %p136, %p137
    %p139 = scmp.ne.s32.totalorder %s128, %s131
    %p140 = scmp.eq.s32.totalorder %s18, 1
    %p141 = por %p139, %p140
    %p142 = scmp.ne.s32.totalorder %s131, %s132
    %p143 = scmp.eq.s32.totalorder %s18, 0
    %p144 = por %p142, %p143
    %p145 = scmp.ne.s32.totalorder %s131, %s132
    %p146 = scmp.eq.s32.totalorder %s19, 1
    %p147 = por %p145, %p146
    %p149 = scmp.ne.s32.totalorder %s132, %s148
    %p150 = scmp.eq.s32.totalorder %s19, 0
    %p151 = por %p149, %p150
    %s152 = ssub.s32 %s20, %s32
    %s153 = ssub.s32 %s21, %s28
    %s154 = sor.u32 %s152, %s153
    %p155 = scmp.eq.s32.totalorder %s154, 0
    %s157 = sadd.s32 %s156, 1
    %s158 = scalar_select %p155, %s156, %s157
    %p161 = pneg %p155
    %p162 = scmp.eq.s32.totalorder %s13, 1
    %p163 = por %p161, %p162
    %p164 = scmp.ne.s32.totalorder %s156, %s159
    %p165 = scmp.eq.s32.totalorder %s13, 0
    %p166 = por %p164, %p165
    %p167 = scmp.ne.s32.totalorder %s156, %s159
    %p168 = scmp.eq.s32.totalorder %s18, 1
    %p169 = por %p167, %p168
    %p170 = scmp.ne.s32.totalorder %s159, %s160
    %p171 = scmp.eq.s32.totalorder %s18, 0
    %p172 = por %p170, %p171
    %p173 = scmp.ne.s32.totalorder %s159, %s160
    %p174 = scmp.eq.s32.totalorder %s19, 1
    %p175 = por %p173, %p174
    %p177 = scmp.ne.s32.totalorder %s160, %s176
    %p178 = scmp.eq.s32.totalorder %s19, 0
    %p179 = por %p177, %p178
    %s180 = ssub.s32 %s20, %s32
    %s181 = ssub.s32 %s21, %s28
    %s182 = sor.u32 %s180, %s181
    %p183 = scmp.eq.s32.totalorder %s182, 0
    %s185 = sadd.s32 %s184, 1
    %s186 = scalar_select %p183, %s184, %s185
    %p189 = pneg %p183
    %p190 = scmp.eq.s32.totalorder %s13, 1
    %p191 = por %p189, %p190
    %p192 = scmp.ne.s32.totalorder %s184, %s187
    %p193 = scmp.eq.s32.totalorder %s13, 0
    %p194 = por %p192, %p193
    %p195 = scmp.ne.s32.totalorder %s184, %s187
    %p196 = scmp.eq.s32.totalorder %s18, 1
    %p197 = por %p195, %p196
    %p198 = scmp.ne.s32.totalorder %s187, %s188
    %p199 = scmp.eq.s32.totalorder %s18, 0
    %p200 = por %p198, %p199
    %p201 = scmp.ne.s32.totalorder %s187, %s188
    %p202 = scmp.eq.s32.totalorder %s19, 1
    %p203 = por %p201, %p202
    %p205 = scmp.ne.s32.totalorder %s188, %s204
    %p206 = scmp.eq.s32.totalorder %s19, 0
    %p207 = por %p205, %p206
    %p208 = scmp.le.s32.totalorder 1, %s13
    %p209 = scmp.lt.s32.totalorder %s13, 3
    %p210 = pnand %p208, %p209
    %p211 = pneg %p210
    // Predicated region
    $region9: #{vq_forward.1} parent=5 // pred_check
      _
    $region10: #{vq_forward.1} parent=5 // pred_check_branch
      %213 = sbr.rel (%p210) target = $region12
    $region11: #{vq_forward.1} parent=5 // pred_region
      %s214 = ssub.s32 %s13, 1
      // Predicated region
      $region13: #{vq_forward.1} parent=11 // pred_check
        %p215 = pneg %p74
      $region14: #{vq_forward.1} parent=11 // pred_check_branch
        %217 = sbr.rel (%p215) target = $region16
      $region15: #{vq_forward.1} parent=11 // pred_region
        _
      $region16: #{vq_forward.1} parent=11 // pred_fallthru
        _
      // Predicated region
      $region17: #{vq_forward.1} parent=11 // pred_check
        %p218 = pneg %p95
      $region18: #{vq_forward.1} parent=11 // pred_check_branch
        %220 = sbr.rel (%p218) target = $region20
      $region19: #{vq_forward.1} parent=11 // pred_region
        _
      $region20: #{vq_forward.1} parent=11 // pred_fallthru
        _
      // Predicated region
      $region21: #{vq_forward.1} parent=11 // pred_check
        %p221 = pneg %p116
      $region22: #{vq_forward.1} parent=11 // pred_check_branch
        %223 = sbr.rel (%p221) target = $region24
      $region23: #{vq_forward.1} parent=11 // pred_region
        _
      $region24: #{vq_forward.1} parent=11 // pred_fallthru
        _
    $region12: #{vq_forward.1} parent=5 // pred_fallthru
      _
    %p224 = scmp.lt.s32.totalorder %s13, 2
    // Predicated region
    $region25: #{vq_forward.1} parent=5 // pred_check
      %p225 = pneg %p224
    $region26: #{vq_forward.1} parent=5 // pred_check_branch
      %227 = sbr.rel (%p225) target = $region28
    $region27: #{vq_forward.1} parent=5 // pred_region
      // Predicated region
      $region29: #{vq_forward.1} parent=27 // pred_check
        %p228 = pneg %p47
      $region30: #{vq_forward.1} parent=27 // pred_check_branch
        %230 = sbr.rel (%p228) target = $region32
      $region31: #{vq_forward.1} parent=27 // pred_region
        %s231 = smul.u32 2, %s21
        %p232 = scmp.lt.s32.totalorder %s20, 1
        %s233 = scalar_select %p232, %s20, 1
        %p234 = scmp.lt.s32.totalorder %s231, 1
        %s235 = scalar_select %p234, %s231, 1
        %s236 = smul.addr %s233, 2
        %s237 = sadd.s32 %s235, %s236
        %s238 = smul.addr %s237, 4
        %s239 = scalar_lea.vmem %s0, %s238
        %s240 = smul.u32 2, %s21
      $region32: #{vq_forward.1} parent=27 // pred_fallthru
        _
    $region28: #{vq_forward.1} parent=5 // pred_fallthru
      _
    %p241 = scmp.le.s32.totalorder 1, %s13
    %p242 = scmp.lt.s32.totalorder %s13, 3
    %p243 = pnand %p241, %p242
    %p244 = pneg %p243
    // Predicated region
    $region33: #{vq_forward.1} parent=5 // pred_check
      _
    $region34: #{vq_forward.1} parent=5 // pred_check_branch
      %246 = sbr.rel (%p243) target = $region36
    $region35: #{vq_forward.1} parent=5 // pred_region
      %s247 = ssub.s32 %s13, 1
      %s248 = smul.u32 2, %s23
      %p249 = scmp.lt.s32.totalorder %s22, 1
      %s250 = scalar_select %p249, %s22, 1
      %p251 = scmp.lt.s32.totalorder %s248, 1
      %s252 = scalar_select %p251, %s248, 1
      %s253 = smul.addr %s250, 2
      %s254 = sadd.s32 %s252, %s253
      %s255 = smul.addr %s254, 4
      %s256 = scalar_lea.vmem %s0, %s255
      %p257 = pneg %p53
      %p258 = pneg %p50
      %p259 = pneg %p74
      %p260 = pneg %p71
      %p261 = pneg %p95
      %p262 = pneg %p92
      %p263 = pneg %p116
      %p264 = pneg %p113
      %p265 = pneg %p144
      %p266 = pneg %p141
      %s267 = smul.u32 2, %s23
      %p268 = scmp.lt.s32.totalorder %s22, 1
      %s269 = scalar_select %p268, %s22, 1
      %p270 = scmp.lt.s32.totalorder %s267, 1
      %s271 = scalar_select %p270, %s267, 1
      %s272 = smul.addr %s269, 2
      %s273 = sadd.s32 %s271, %s272
      %s274 = smul.addr %s273, 4
      %s275 = scalar_lea.vmem %s4, %s274
      %p276 = pneg %p172
      %p277 = pneg %p169
      %s278 = smul.u32 2, %s23
      %p279 = scmp.lt.s32.totalorder %s22, 1
      %s280 = scalar_select %p279, %s22, 1
      %p281 = scmp.lt.s32.totalorder %s278, 1
      %s282 = scalar_select %p281, %s278, 1
      %s283 = smul.addr %s280, 2
      %s284 = sadd.s32 %s282, %s283
      %s285 = scalar_lea.vmem %s5, %s284
      %p286 = pneg %p200
      %p287 = pneg %p197
      %p288 = scmp.lt.s32.totalorder %s22, 1
      %s289 = scalar_select %p288, %s22, 1
      %p290 = scmp.lt.s32.totalorder %s23, 0
      %s291 = scalar_select %p290, %s23, 0
      %s292 = sadd.s32 %s291, %s289
      %s293 = scalar_lea.vmem %s6, %s292
      %s294 = smul.u32 2, %s23
      %p295 = scmp.lt.s32.totalorder %s22, 1
      %s296 = scalar_select %p295, %s22, 1
      %p297 = scmp.lt.s32.totalorder %s294, 1
      %s298 = scalar_select %p297, %s294, 1
      %s299 = smul.addr %s296, 2
      %s300 = sadd.s32 %s298, %s299
      %s301 = smul.addr %s300, 4
      %s302 = scalar_lea.vmem %s0, %s301
      %s303 = smul.u32 2, %s23
      %s304 = smul.u32 2, %s23
      %p305 = scmp.lt.s32.totalorder %s22, 1
      %s306 = scalar_select %p305, %s22, 1
      %p307 = scmp.lt.s32.totalorder %s304, 1
      %s308 = scalar_select %p307, %s304, 1
      %s309 = smul.addr %s306, 2
      %s310 = sadd.s32 %s308, %s309
      %s311 = smul.addr %s310, 4
      %s312 = scalar_lea.vmem %s4, %s311
      %s313 = smul.u32 2, %s23
      %s314 = smul.u32 2, %s23
      %p315 = scmp.lt.s32.totalorder %s22, 1
      %s316 = scalar_select %p315, %s22, 1
      %p317 = scmp.lt.s32.totalorder %s314, 1
      %s318 = scalar_select %p317, %s314, 1
      %s319 = smul.addr %s316, 2
      %s320 = sadd.s32 %s318, %s319
      %s321 = scalar_lea.vmem %s5, %s320
      %s322 = smul.u32 2, %s23
      %p323 = scmp.lt.s32.totalorder %s22, 1
      %s324 = scalar_select %p323, %s22, 1
      %p325 = scmp.lt.s32.totalorder %s23, 0
      %s326 = scalar_select %p325, %s23, 0
      %s327 = sadd.s32 %s326, %s324
      %s328 = scalar_lea.vmem %s6, %s327
      %v329 = vld [vmem:[%s302] sm:$0xff]
      %v330 = vld [vmem:[%s1] sm:$0xff]
      %v331 = vld [vmem:[%s1 + $0x8] sm:$0xff]
      %v333 = vcombine.high %v329, %v329
      %vm334 = vcmask 31744
      %v336 = vsel %vm334, %v330, 0
      %v339 = vsel %vm334, %v331, 0
      %vm341 = vcmask 1043456
      %v342 = vsel %vm341, %v329, 0
      %v344 = vsel %vm341, %v333, 0
      %346 = vmatprep.subr.mxu0 %v344
      %347 = vmatpush1.msra.mxu0 %v342
      %348 = vmatprep.subr.mxu0 0.0
      %349 = vmatpush1.msra.mxu0 0.0
      %350 = vmatprep.subr.mxu0 0.0
      %351 = vmatpush1.msra.mxu0 0.0
      %352 = vmatprep.subr.mxu0 0.0
      %353 = vmatpush1.msra.mxu0 0.0
      %354 = vmatprep.subr.mxu0 0.0
      %355 = vmatpush1.msra.mxu0 0.0
      %356 = vmatprep.subr.mxu0 0.0
      %357 = vmatpush1.msra.mxu0 0.0
      %358 = vmatprep.subr.mxu0 0.0
      %359 = vmatpush1.msra.mxu0 0.0
      %360 = vmatprep.subr.mxu0 0.0
      %361 = vmatpush1.msra.mxu0 0.0
      %362 = vmatprep.subr.mxu0 0.0
      %363 = vmatpush1.msra.mxu0 0.0
      %364 = vmatprep.subr.mxu0 0.0
      %365 = vmatpush1.msra.mxu0 0.0
      %366 = vmatprep.subr.mxu0 0.0
      %367 = vmatpush1.msra.mxu0 0.0
      %368 = vmatprep.subr.mxu0 0.0
      %369 = vmatpush1.msra.mxu0 0.0
      %370 = vmatprep.subr.mxu0 0.0
      %371 = vmatpush1.msra.mxu0 0.0
      %372 = vmatprep.subr.mxu0 0.0
      %373 = vmatpush1.msra.mxu0 0.0
      %374 = vmatprep.subr.mxu0 0.0
      %375 = vmatpush1.msra.mxu0 0.0
      %376 = vmatprep.subr.mxu0 0.0
      %377 = vmatpush1.msra.mxu0 0.0
      %378 = vmatprep.subr.mxu0 0.0
      %379 = vmatpush1.msra.mxu0 0.0
      %380 = vmatprep.subr.mxu0 0.0
      %381 = vmatpush1.msra.mxu0 0.0
      %382 = vmatprep.subr.mxu0 0.0
      %383 = vmatpush1.msra.mxu0 0.0
      %384 = vmatprep.subr.mxu0 0.0
      %385 = vmatpush1.msra.mxu0 0.0
      %386 = vmatprep.subr.mxu0 0.0
      %387 = vmatpush1.msra.mxu0 0.0
      %388 = vmatprep.subr.mxu0 0.0
      %389 = vmatpush1.msra.mxu0 0.0
      %390 = vmatprep.subr.mxu0 0.0
      %391 = vmatpush1.msra.mxu0 0.0
      %392 = vmatprep.subr.mxu0 0.0
      %393 = vmatpush1.msra.mxu0 0.0
      %394 = vmatprep.subr.mxu0 0.0
      %395 = vmatpush1.msra.mxu0 0.0
      %396 = vmatprep.subr.mxu0 0.0
      %397 = vmatpush1.msra.mxu0 0.0
      %398 = vmatprep.subr.mxu0 0.0
      %399 = vmatpush1.msra.mxu0 0.0
      %400 = vmatprep.subr.mxu0 0.0
      %401 = vmatpush1.msra.mxu0 0.0
      %402 = vmatprep.subr.mxu0 0.0
      %403 = vmatpush1.msra.mxu0 0.0
      %404 = vmatprep.subr.mxu0 0.0
      %405 = vmatpush1.msra.mxu0 0.0
      %406 = vmatprep.subr.mxu0 0.0
      %407 = vmatpush1.msra.mxu0 0.0
      %408 = vmatprep.subr.mxu0 0.0
      %409 = vmatpush1.msra.mxu0 0.0
      %410 = vmatprep.mubr.f32.mxu0 0.0
      %411 = vmatmul.mubr.f32.gmra.mrb[0].mxu0 %v336
      %v412 = vpop.f32.mrb[0].mxu0
      %v413 = vadd.f32 0.0, %v412
      %v414 = vpop.f32.mrb[0].mxu0
      %v415 = vadd.f32 0.0, %v414
      %416 = vmatprep.mubr.f32.mxu0 0.0
      %417 = vmatmul.mubr.f32.gmra.mrb[0].mxu0 %v339
      %v418 = vpop.f32.mrb[0].mxu0
      %v419 = vadd.f32 0.0, %v418
      %v420 = vpop.f32.mrb[0].mxu0
      %v421 = vadd.f32 0.0, %v420
      %422 = vdwg.mxu0
      %v423 = vld [vmem:[%s3] sm:$0xff]
      %v424 = vld [vmem:[%s3 + $0x8] sm:$0xff]
      %426 = vset.pattern.permute.xlu0 0
      %427 = vperm.xlu0 %426, %v423
      %v428 = vpop.permute.xlu0 %427
      %431 = vset.pattern.permute.xlu0 0
      %432 = vperm.xlu0 %431, %v424
      %v433 = vpop.permute.xlu0 %432
      %v435 = vsub.f32 %v428, %v413
      %v436 = vsub.f32 %v428, %v415
      %v437 = vsub.f32 %v433, %v419
      %v438 = vsub.f32 %v433, %v421
      %v439 = vlaneseq
      %v440 = vshrl.u32 %v439, 7
      %v441 = vadd.s32 %v440, 8
      %v442 = vmin.f32 %v435, %v437
      %v443 = vrot.slane %v442, 4
      %v444 = vmin.f32 %v442, %v443
      %v445 = vrot.slane %v444, 2
      %v446 = vmin.f32 %v444, %v445
      %v447 = vrot.slane %v446, 1
      %v448 = vmin.f32 %v446, %v447
      %v449 = vmin.f32 %v436, %v438
      %v450 = vrot.slane %v449, 4
      %v451 = vmin.f32 %v449, %v450
      %v452 = vrot.slane %v451, 2
      %v453 = vmin.f32 %v451, %v452
      %v454 = vrot.slane %v453, 1
      %v455 = vmin.f32 %v453, %v454
      %vm456 = vcmp.eq.f32.partialorder %v435, %v448
      %vm457 = vcmp.eq.f32.partialorder %v436, %v455
      %vm458 = vcmp.eq.f32.partialorder %v437, %v448
      %vm459 = vcmp.eq.f32.partialorder %v438, %v455
      %v460 = vsel %vm456, %v440, 16
      %v461 = vsel %vm457, %v440, 16
      %v462 = vsel %vm458, %v441, 16
      %v463 = vsel %vm459, %v441, 16
      %vm464 = vcmp.lt.s32.totalorder %v460, %v462
      %v465 = vsel %vm464, %v460, %v462
      %v466 = vrot.slane %v465, 4
      %vm467 = vcmp.lt.s32.totalorder %v465, %v466
      %v468 = vsel %vm467, %v465, %v466
      %v469 = vrot.slane %v468, 2
      %vm470 = vcmp.lt.s32.totalorder %v468, %v469
      %v471 = vsel %vm470, %v468, %v469
      %v472 = vrot.slane %v471, 1
      %vm473 = vcmp.lt.s32.totalorder %v471, %v472
      %v474 = vsel %vm473, %v471, %v472
      %vm475 = vcmp.lt.s32.totalorder %v461, %v463
      %v476 = vsel %vm475, %v461, %v463
      %v477 = vrot.slane %v476, 4
      %vm478 = vcmp.lt.s32.totalorder %v476, %v477
      %v479 = vsel %vm478, %v476, %v477
      %v480 = vrot.slane %v479, 2
      %vm481 = vcmp.lt.s32.totalorder %v479, %v480
      %v482 = vsel %vm481, %v479, %v480
      %v483 = vrot.slane %v482, 1
      %vm484 = vcmp.lt.s32.totalorder %v482, %v483
      %v485 = vsel %vm484, %v482, %v483
      %v486 = vcombine.low %v474, %v485
      %v488 = vunpack.c.l.s4 1966171168
      %v489 = vunpack.c.0.s8 %v488
      %v490 = vlaneseq
      %v491 = vshrl.u32 %v490, 7
      %v492 = vsub.s32 %v489, %v491
      %v493 = vrot.slane %v486, %v492
      %v495 = vunpack.c.l.s4 1966171168
      %v496 = vunpack.c.0.s8 %v495
      %v497 = vlaneseq
      %v498 = vshrl.u32 %v497, 7
      %v499 = vsub.s32 %v496, %v498
      %v500 = vrot.slane %v493, %v499
      %v501 = vlaneseq
      %vm502 = vcmp.ge.s32.totalorder %v501, 0
      %vm503 = vcmp.lt.s32.totalorder %v501, 256
      %vm504 = vmand %vm502, %vm503
      %505 = vst.msk [vmem:[%s321] sm:$0x3] %vm504, %v500
      %vm506 = vcmp.eq.s32.totalorder %v440, %v474
      %vm507 = vcmp.eq.s32.totalorder %v440, %v485
      %vm508 = vcmp.eq.s32.totalorder %v441, %v474
      %vm509 = vcmp.eq.s32.totalorder %v441, %v485
      %v510 = vsel %vm506, 1, 0
      %v511 = vsel %vm507, 1, 0
      %v512 = vsel %vm508, 1, 0
      %v513 = vsel %vm509, 1, 0
      %v514 = vcvt.s32.f32 %v510
      %v515 = vcvt.s32.f32 %v511
      %v516 = vcvt.s32.f32 %v512
      %v517 = vcvt.s32.f32 %v513
      %v518 = vld [vmem:[%s2] sm:$0xf]
      %vm519 = vcmask 130048
      %v521 = vsel %vm519, %v518, 0
      %523 = vmatprep.subr.mxu0 %v515
      %524 = vmatpush1.msra.mxu0 %v514
      %525 = vmatprep.subr.mxu0 %v517
      %526 = vmatpush1.msra.mxu0 %v516
      %527 = vmatprep.subr.mxu0 0.0
      %528 = vmatpush1.msra.mxu0 0.0
      %529 = vmatprep.subr.mxu0 0.0
      %530 = vmatpush1.msra.mxu0 0.0
      %531 = vmatprep.subr.mxu0 0.0
      %532 = vmatpush1.msra.mxu0 0.0
      %533 = vmatprep.subr.mxu0 0.0
      %534 = vmatpush1.msra.mxu0 0.0
      %535 = vmatprep.subr.mxu0 0.0
      %536 = vmatpush1.msra.mxu0 0.0
      %537 = vmatprep.subr.mxu0 0.0
      %538 = vmatpush1.msra.mxu0 0.0
      %539 = vmatprep.subr.mxu0 0.0
      %540 = vmatpush1.msra.mxu0 0.0
      %541 = vmatprep.subr.mxu0 0.0
      %542 = vmatpush1.msra.mxu0 0.0
      %543 = vmatprep.subr.mxu0 0.0
      %544 = vmatpush1.msra.mxu0 0.0
      %545 = vmatprep.subr.mxu0 0.0
      %546 = vmatpush1.msra.mxu0 0.0
      %547 = vmatprep.subr.mxu0 0.0
      %548 = vmatpush1.msra.mxu0 0.0
      %549 = vmatprep.subr.mxu0 0.0
      %550 = vmatpush1.msra.mxu0 0.0
      %551 = vmatprep.subr.mxu0 0.0
      %552 = vmatpush1.msra.mxu0 0.0
      %553 = vmatprep.subr.mxu0 0.0
      %554 = vmatpush1.msra.mxu0 0.0
      %555 = vmatprep.subr.mxu0 0.0
      %556 = vmatpush1.msra.mxu0 0.0
      %557 = vmatprep.subr.mxu0 0.0
      %558 = vmatpush1.msra.mxu0 0.0
      %559 = vmatprep.subr.mxu0 0.0
      %560 = vmatpush1.msra.mxu0 0.0
      %561 = vmatprep.subr.mxu0 0.0
      %562 = vmatpush1.msra.mxu0 0.0
      %563 = vmatprep.subr.mxu0 0.0
      %564 = vmatpush1.msra.mxu0 0.0
      %565 = vmatprep.subr.mxu0 0.0
      %566 = vmatpush1.msra.mxu0 0.0
      %567 = vmatprep.subr.mxu0 0.0
      %568 = vmatpush1.msra.mxu0 0.0
      %569 = vmatprep.subr.mxu0 0.0
      %570 = vmatpush1.msra.mxu0 0.0
      %571 = vmatprep.subr.mxu0 0.0
      %572 = vmatpush1.msra.mxu0 0.0
      %573 = vmatprep.subr.mxu0 0.0
      %574 = vmatpush1.msra.mxu0 0.0
      %575 = vmatprep.subr.mxu0 0.0
      %576 = vmatpush1.msra.mxu0 0.0
      %577 = vmatprep.subr.mxu0 0.0
      %578 = vmatpush1.msra.mxu0 0.0
      %579 = vmatprep.subr.mxu0 0.0
      %580 = vmatpush1.msra.mxu0 0.0
      %581 = vmatprep.subr.mxu0 0.0
      %582 = vmatpush1.msra.mxu0 0.0
      %583 = vmatprep.subr.mxu0 0.0
      %584 = vmatpush1.msra.mxu0 0.0
      %585 = vmatprep.subr.mxu0 0.0
      %586 = vmatpush1.msra.mxu0 0.0
      %587 = vmatprep.mubr.f32.mxu0 0.0
      %588 = vmatmul.mubr.f32.gmra.mrb[0].mxu0 %v521
      %v589 = vpop.f32.mrb[0].mxu0
      %v590 = vadd.f32 0.0, %v589
      %v591 = vpop.f32.mrb[0].mxu0
      %v592 = vadd.f32 0.0, %v591
      %593 = vdwg.mxu0
      %v596 = vcombine.low %v590, %v592
      %598 = vst [vmem:[%s312] sm:$0xff] %v596
      %v600 = vsub.f32 %v590, %v329
      %v601 = vsub.f32 %v592, %v333
      %v602 = vmul.f32 %v600, %v600
      %v603 = vmul.f32 %v601, %v601
      %v604 = vsel %vm341, %v602, 0.0
      %v605 = vsel %vm341, %v603, 0.0
      %v606 = vadd.f32 %v604, %v605
      %607 = vadd.xlane.f32.xlu0 %v606
      %v608 = vpop.xlane.xlu0 %607
      %v609 = vrot.slane %v608, 4
      %v610 = vadd.f32 %v608, %v609
      %v611 = vrot.slane %v610, 2
      %v612 = vadd.f32 %v610, %v611
      %v613 = vrot.slane %v612, 1
      %v614 = vadd.f32 %v612, %v613
      %s615 = vtos %v614
      %v616 = vstv %s615
      %617 = vst [vmem:[%s328] sm:$0x1] %v616
      %s618 = smul.u32 2, %s23
      %p619 = scmp.lt.s32.totalorder %s22, 1
      %s620 = scalar_select %p619, %s22, 1
      %p621 = scmp.lt.s32.totalorder %s618, 1
      %s622 = scalar_select %p621, %s618, 1
      %s623 = smul.addr %s620, 2
      %s624 = sadd.s32 %s622, %s623
      %s625 = smul.addr %s624, 4
      %s626 = scalar_lea.vmem %s4, %s625
      %s627 = smul.u32 2, %s23
      %p628 = scmp.lt.s32.totalorder %s22, 1
      %s629 = scalar_select %p628, %s22, 1
      %p630 = scmp.lt.s32.totalorder %s627, 1
      %s631 = scalar_select %p630, %s627, 1
      %s632 = smul.addr %s629, 2
      %s633 = sadd.s32 %s631, %s632
      %s634 = scalar_lea.vmem %s5, %s633
      %p635 = scmp.lt.s32.totalorder %s22, 1
      %s636 = scalar_select %p635, %s22, 1
      %p637 = scmp.lt.s32.totalorder %s23, 0
      %s638 = scalar_select %p637, %s23, 0
      %s639 = sadd.s32 %s638, %s636
      %s640 = scalar_lea.vmem %s6, %s639
      // Predicated region
      $region37: #{vq_forward.1} parent=35 // pred_check
        %p641 = pneg %p141
      $region38: #{vq_forward.1} parent=35 // pred_check_branch
        %643 = sbr.rel (%p641) target = $region40
      $region39: #{vq_forward.1} parent=35 // pred_region
        %s644 = smul.u32 2, %s23
      $region40: #{vq_forward.1} parent=35 // pred_fallthru
        _
      // Predicated region
      $region41: #{vq_forward.1} parent=35 // pred_check
        %p645 = pneg %p169
      $region42: #{vq_forward.1} parent=35 // pred_check_branch
        %647 = sbr.rel (%p645) target = $region44
      $region43: #{vq_forward.1} parent=35 // pred_region
        %s648 = smul.u32 2, %s23
      $region44: #{vq_forward.1} parent=35 // pred_fallthru
        _
      // Predicated region
      $region45: #{vq_forward.1} parent=35 // pred_check
        %p649 = pneg %p197
      $region46: #{vq_forward.1} parent=35 // pred_check_branch
        %651 = sbr.rel (%p649) target = $region48
      $region47: #{vq_forward.1} parent=35 // pred_region
        _
      $region48: #{vq_forward.1} parent=35 // pred_fallthru
        _
    $region36: #{vq_forward.1} parent=5 // pred_fallthru
      _
    %p652 = scmp.le.s32.totalorder 2, %s13
    // Predicated region
    $region49: #{vq_forward.1} parent=5 // pred_check
      %p653 = pneg %p652
    $region50: #{vq_forward.1} parent=5 // pred_check_branch
      %655 = sbr.rel (%p653) target = $region52
    $region51: #{vq_forward.1} parent=5 // pred_region
      %s656 = ssub.s32 %s13, 2
      // Predicated region
      $region53: #{vq_forward.1} parent=51 // pred_check
        %p657 = pneg %p147
      $region54: #{vq_forward.1} parent=51 // pred_check_branch
        %659 = sbr.rel (%p657) target = $region56
      $region55: #{vq_forward.1} parent=51 // pred_region
        %s660 = smul.u32 2, %s25
        %p661 = scmp.lt.s32.totalorder %s24, 1
        %s662 = scalar_select %p661, %s24, 1
        %p663 = scmp.lt.s32.totalorder %s660, 1
        %s664 = scalar_select %p663, %s660, 1
        %s665 = smul.addr %s662, 2
        %s666 = sadd.s32 %s664, %s665
        %s667 = smul.addr %s666, 4
        %s668 = scalar_lea.vmem %s4, %s667
      $region56: #{vq_forward.1} parent=51 // pred_fallthru
        _
      // Predicated region
      $region57: #{vq_forward.1} parent=51 // pred_check
        %p669 = pneg %p175
      $region58: #{vq_forward.1} parent=51 // pred_check_branch
        %671 = sbr.rel (%p669) target = $region60
      $region59: #{vq_forward.1} parent=51 // pred_region
        %s672 = smul.u32 2, %s25
        %p673 = scmp.lt.s32.totalorder %s24, 1
        %s674 = scalar_select %p673, %s24, 1
        %p675 = scmp.lt.s32.totalorder %s672, 1
        %s676 = scalar_select %p675, %s672, 1
        %s677 = smul.addr %s674, 2
        %s678 = sadd.s32 %s676, %s677
        %s679 = scalar_lea.vmem %s5, %s678
      $region60: #{vq_forward.1} parent=51 // pred_fallthru
        _
      // Predicated region
      $region61: #{vq_forward.1} parent=51 // pred_check
        %p680 = pneg %p203
      $region62: #{vq_forward.1} parent=51 // pred_check_branch
        %682 = sbr.rel (%p680) target = $region64
      $region63: #{vq_forward.1} parent=51 // pred_region
        %p683 = scmp.lt.s32.totalorder %s24, 1
        %s684 = scalar_select %p683, %s24, 1
        %p685 = scmp.lt.s32.totalorder %s25, 0
        %s686 = scalar_select %p685, %s25, 0
        %s687 = sadd.s32 %s686, %s684
        %s688 = scalar_lea.vmem %s6, %s687
      $region64: #{vq_forward.1} parent=51 // pred_fallthru
        _
    $region52: #{vq_forward.1} parent=5 // pred_fallthru
      _
  $region6: #{vq_forward.1} parent=0 // loop_footer
    %s17 = sadd.s32 1, %s13
  $region7: #{vq_forward.1} parent=0 // loop_footer_branch
    %12 = sbr.rel target = $region3
  $region8: #{vq_forward.1} parent=0 // loop_exit
    _

</llo_original>
